<compile_context>
chip_gen: v7x
topology: tpu7x:2x2x1
jax: 0.10.0
libtpu: 0.0.40
codegen_flags: <defaults>
</compile_context>

<pallas_src>
from functools import partial

import jax
import jax.numpy as jnp
from jax import lax
from jax.experimental import pallas as pl
from jax.experimental.pallas import tpu as pltpu

# -------- synthetic config (mirrors cfg.model.*) --------------------------------
ASSOC_DIM = 32                    # cfg.model.associationSpace_dim
DIM_QK = 16                       # cfg.model.hopfield.dim_QK  (per-head hidden size)
HEADS = 2                         # cfg.model.hopfield.heads
HIDDEN = HEADS * DIM_QK           # total projected width (hd)
BETA = 1.0 / (DIM_QK ** 0.5)      # cfg.model.hopfield.beta (scaling of q)
LN_EPS = 1e-5

SMALL_N_ROWS = 1024               # single-step fast-path threshold (rows)


def _norm_noaffine(x):
    """LayerNorm without affine — gamma/beta are folded into the projections."""
    mu = jnp.mean(x, axis=-1, keepdims=True)
    var = jnp.mean(jnp.square(x - mu), axis=-1, keepdims=True)
    return (x - mu) * lax.rsqrt(var + LN_EPS)


# ------------------------------- kernel body --------------------------------------

def _hopfield_kernel(s_ref, k_ref, v_ref, wq_ref, wo_ref, bias_ref, out_ref):
    """Fused Hopfield retrieval + residual for one row-tile of state patterns.

    s_ref    : [tile_n, D]     state patterns (query ++ actives ++ inactives rows)
    k_ref    : [M, hd]         pre-projected keys   (context path, hoisted, resident)
    v_ref    : [M, hd]         pre-projected values (context path, hoisted, resident)
    wq_ref   : [D, hd]         LN-affine + beta folded query projection
    wo_ref   : [hd, D]         output projection
    bias_ref : [1, hd + D]     [bq*beta | bo]
    out_ref  : [tile_n, D]     s + Hopfield(s | context)
    """
    hd = HIDDEN
    s = s_ref[...].astype(jnp.float32)

    # State-pattern LayerNorm (affine folded into Wq/bq) + Q projection (beta folded).
    xhat = _norm_noaffine(s)
    q = jnp.dot(xhat, wq_ref[...].astype(jnp.float32),
                preferred_element_type=jnp.float32)
    q = q + bias_ref[:, :hd].astype(jnp.float32)

    k = k_ref[...].astype(jnp.float32)
    v = v_ref[...].astype(jnp.float32)

    # Per-head association (softmax attention), heads unrolled statically.
    head_outs = []
    for h in range(HEADS):
        sl = slice(h * DIM_QK, (h + 1) * DIM_QK)
        logits = lax.dot_general(                      # contract on dqk, no k.T
            q[:, sl], k[:, sl],
            dimension_numbers=(((1,), (1,)), ((), ())),
            preferred_element_type=jnp.float32)         # [tile_n, M]
        logits = logits - jnp.max(logits, axis=-1, keepdims=True)
        p = jnp.exp(logits)
        p = p * pl.reciprocal(jnp.sum(p, axis=-1, keepdims=True), approx=True)
        head_outs.append(jnp.dot(p, v[:, sl],
                                 preferred_element_type=jnp.float32))  # [tile_n, dqk]

    # Lane-stack head outputs (cheap, XLU has slack) and do ONE K=hd output matmul.
    ho = jnp.concatenate(head_outs, axis=-1)                            # [tile_n, hd]
    s_h = jnp.dot(ho, wo_ref[...].astype(jnp.float32),
                  preferred_element_type=jnp.float32)                   # [tile_n, D]

    # Output bias + residual add (ContextModule.forward: s_updated = s_flat + s_h).
    out_ref[...] = (s + s_h + bias_ref[:, hd:].astype(jnp.float32)).astype(out_ref.dtype)


# ------------------------------- tiling / wrapper ----------------------------------

def _round_up(x, m):
    return ((x + m - 1) // m) * m


def _vmem_capacity_bytes():
    """Device VMEM capacity; conservative 64 MiB (v7x per-TC) fallback."""
    try:
        info = pltpu.get_tpu_info()
        cap = int(getattr(info, "vmem_capacity_bytes", 0) or 0)
        if cap > 0:
            return cap
    except Exception:
        pass
    return 64 << 20


def _choose_tile_n(m, d, hd, io_bytes, tile_budget_bytes):
    """tile_n <= (budget - resident) / per_row, dominated by the [tile, M] f32 logits."""
    # VMEM-resident arrays (constant index_maps): K, V + weights/biases (x2 slack).
    resident = 2 * (2 * m * hd * io_bytes) + 2 * ((d * hd + hd * d + hd + d) * 4)
    per_row = 4 * d * io_bytes            # s input tile, double-buffered
    per_row += 4 * d * io_bytes           # output tile, double-buffered
    per_row += 2 * m * 4                  # per-head [row, M] logits + p (f32, 2 live)
    per_row += (2 * d + 2 * hd) * 4       # xhat / q / head outs / residual row (f32)
    avail = max(tile_budget_bytes - resident, 512 * per_row)
    tile = int(min(max(avail // per_row, 512), 32768))
    return tile - (tile % 8)


def hopfield_pallas(s_flat, k, v, packed):
    """s_flat: [N, D], k/v: [M, hd] (pre-projected context) -> [N, D] incl. residual."""
    n, d = s_flat.shape
    m, hd = k.shape
    io_bytes = jnp.dtype(s_flat.dtype).itemsize

    vmem_cap = _vmem_capacity_bytes()
    # Raise the scoped-VMEM limit explicitly (v5e defaults to 16 MiB), with headroom.
    vmem_limit = int(vmem_cap * 0.75)

    if n <= SMALL_N_ROWS:
        tile_n = _round_up(n, 8)           # single grid step: no pipelining overhead
    else:
        tile_n = _choose_tile_n(m, d, hd, io_bytes, int(vmem_limit * 0.6))

    n_pad = _round_up(n, tile_n)
    if n_pad != n:
        s_flat = jnp.pad(s_flat, ((0, n_pad - n), (0, 0)))

    grid = (n_pad // tile_n,)
    out = pl.pallas_call(
        _hopfield_kernel,
        out_shape=jax.ShapeDtypeStruct((n_pad, d), s_flat.dtype),
        grid=grid,
        in_specs=[
            pl.BlockSpec((tile_n, d), lambda i: (i, 0)),     # s rows: streamed
            pl.BlockSpec((m, hd), lambda i: (0, 0)),         # K: VMEM-resident
            pl.BlockSpec((m, hd), lambda i: (0, 0)),         # V: VMEM-resident
            pl.BlockSpec((d, hd), lambda i: (0, 0)),         # Wq (affine+beta folded)
            pl.BlockSpec((hd, d), lambda i: (0, 0)),         # Wo
            pl.BlockSpec((1, hd + d), lambda i: (0, 0)),     # [bq*beta | bo]
        ],
        out_specs=pl.BlockSpec((tile_n, d), lambda i: (i, 0)),
        compiler_params=pltpu.CompilerParams(
            dimension_semantics=("parallel",),
            vmem_limit_bytes=vmem_limit),
    )(s_flat, k, v, packed["wq"], packed["wo"], packed["bias_qo"])

    return out[:n] if n_pad != n else out


def context_module_forward(query_embedding, support_actives_embedding,
                           support_inactives_embedding, context_set_embedding,
                           params, io_dtype=None):
    """JAX/Pallas re-implementation of ContextModule.forward.

    query_embedding:              [B, 1, D]
    support_actives_embedding:    [B, Na, D]
    support_inactives_embedding:  [B, Ni, D]
    context_set_embedding:        [1, M, D]
    io_dtype: optional streaming dtype (e.g. jnp.bfloat16) for the HBM-bound s/out
              path; accumulation stays f32 inside the kernel.
    """
    s = jnp.concatenate(
        (query_embedding, support_actives_embedding, support_inactives_embedding),
        axis=1)                                             # [B, T, D]
    b, t, d = s.shape
    s_flat = s.reshape(b * t, d)                            # [B*T, D]
    if io_dtype is not None:
        s_flat = s_flat.astype(io_dtype)
    ctx = context_set_embedding.reshape(context_set_embedding.shape[1], d)

    # Grid-invariant context path, hoisted: LN(ctx) + fused K/V projection run ONCE
    # per forward (plain XLA), not once per row-tile inside the kernel.
    hd = HIDDEN
    xhat_c = _norm_noaffine(ctx.astype(jnp.float32))
    kv = xhat_c @ params["w_kv"] + params["b_kv"]           # [M, 2*hd]
    k = kv[:, :hd].astype(s_flat.dtype)
    v = kv[:, hd:].astype(s_flat.dtype)

    s_updated = hopfield_pallas(s_flat, k, v, params)       # [B*T, D] (residual inside)
    s_updated = s_updated.reshape(b, t, d)

    na = support_actives_embedding.shape[1]
    query_out = s_updated[:, 0:1, :]
    actives_out = s_updated[:, 1:na + 1, :]
    inactives_out = s_updated[:, na + 1:, :]
    return query_out, actives_out, inactives_out


# ------------------------ parameter construction / folding ------------------------

def init_params(key, d=ASSOC_DIM, dqk=DIM_QK, heads=HEADS):
    """Deterministic synthetic init (mimics init_weights('linear') style scaling)."""
    hd = heads * dqk
    ks = jax.random.split(key, 4)

    def xavier(k, shape):
        fan_in, fan_out = shape[0], shape[1]
        limit = (6.0 / (fan_in + fan_out)) ** 0.5
        return jax.random.uniform(k, shape, jnp.float32, -limit, limit)

    return {
        # LayerNorm affine params (elementwise_affine=True defaults: gamma=1, beta=0)
        "ln_state_g": jnp.ones((1, d), jnp.float32),
        "ln_state_b": jnp.zeros((1, d), jnp.float32),
        "ln_stored_g": jnp.ones((1, d), jnp.float32),
        "ln_stored_b": jnp.zeros((1, d), jnp.float32),
        "ln_proj_g": jnp.ones((1, d), jnp.float32),
        "ln_proj_b": jnp.zeros((1, d), jnp.float32),
        # Projection weights stored pre-transposed ([in, out]) for x @ W.
        "wq": xavier(ks[0], (d, hd)), "bq": jnp.zeros((1, hd), jnp.float32),
        "wk": xavier(ks[1], (d, hd)), "bk": jnp.zeros((1, hd), jnp.float32),
        "wv": xavier(ks[2], (d, hd)), "bv": jnp.zeros((1, hd), jnp.float32),
        "wo": xavier(ks[3], (hd, d)), "bo": jnp.zeros((1, d), jnp.float32),
    }


def fold_params(raw):
    """One-time host-side precompute: fold LN affines + beta and pack.

    LN(x)@W + b  ==  xhat @ (diag(gamma)@W) + (beta@W + b), xhat = plain normalization.
    BETA is folded into the Q projection/bias; K/V weights are packed into one slab
    used once per forward in the hoisted context path.
    """
    wq = raw["wq"] * raw["ln_state_g"].T * BETA
    bq = (raw["ln_state_b"] @ raw["wq"] + raw["bq"]) * BETA
    wk = raw["wk"] * raw["ln_stored_g"].T
    bk = raw["ln_stored_b"] @ raw["wk"] + raw["bk"]
    wv = raw["wv"] * raw["ln_proj_g"].T
    bv = raw["ln_proj_b"] @ raw["wv"] + raw["bv"]
    return {
        "wq": wq,                                              # [D, hd]   (kernel)
        "wo": raw["wo"],                                       # [hd, D]   (kernel)
        "bias_qo": jnp.concatenate([bq, raw["bo"]], axis=1),   # [1, hd+D] (kernel)
        "w_kv": jnp.concatenate([wk, wv], axis=1),             # [D, 2*hd] (hoisted)
        "b_kv": jnp.concatenate([bk, bv], axis=1),             # [1, 2*hd] (hoisted)
    }


if __name__ == "__main__":
    key = jax.random.PRNGKey(0)
    k_q, k_a, k_i, k_c, k_p = jax.random.split(key, 5)

    B, NA, NI, M, D = 2, 3, 4, 8, ASSOC_DIM

    query = jax.random.normal(k_q, (B, 1, D), jnp.float32)
    actives = jax.random.normal(k_a, (B, NA, D), jnp.float32)
    inactives = jax.random.normal(k_i, (B, NI, D), jnp.float32)
    context = jax.random.normal(k_c, (1, M, D), jnp.float32)

    packed = fold_params(init_params(k_p))   # host-side one-time weight folding

    # f32 path (reference semantics).
    fwd = jax.jit(partial(context_module_forward, params=packed))
    q_out, a_out, i_out = fwd(query, actives, inactives, context)
    jax.block_until_ready((q_out, a_out, i_out))

    assert q_out.shape == (B, 1, D)
    assert a_out.shape == (B, NA, D)
    assert i_out.shape == (B, NI, D)
    assert bool(jnp.all(jnp.isfinite(q_out)))
    assert bool(jnp.all(jnp.isfinite(a_out)))
    assert bool(jnp.all(jnp.isfinite(i_out)))

    # bf16 streaming-I/O path (HBM-byte optimization for v6e/v7x) — exercise once.
    fwd_bf16 = jax.jit(partial(context_module_forward, params=packed,
                               io_dtype=jnp.bfloat16))
    qb, ab, ib = fwd_bf16(query, actives, inactives, context)
    jax.block_until_ready((qb, ab, ib))
    assert qb.shape == (B, 1, D) and ab.shape == (B, NA, D) and ib.shape == (B, NI, D)
    assert bool(jnp.all(jnp.isfinite(qb.astype(jnp.float32))))
    assert bool(jnp.all(jnp.isfinite(ab.astype(jnp.float32))))
    assert bool(jnp.all(jnp.isfinite(ib.astype(jnp.float32))))

    print("KERNEL_OK")
</pallas_src>

<mosaic_0001>
module attributes {stable_mosaic.version = 11 : i64} {
  func.func @_hopfield_kernel(%arg0: i32, %arg1: memref<16x32xf32, #tpu.memory_space<vmem>>, %arg2: memref<8x32xf32, #tpu.memory_space<vmem>>, %arg3: memref<8x32xf32, #tpu.memory_space<vmem>>, %arg4: memref<32x32xf32, #tpu.memory_space<vmem>>, %arg5: memref<32x32xf32, #tpu.memory_space<vmem>>, %arg6: memref<1x64xf32, #tpu.memory_space<vmem>>, %arg7: memref<16x32xf32, #tpu.memory_space<vmem>>) attributes {dimension_semantics = [#tpu.dimension_semantics<parallel>], iteration_bounds = array<i64: 1>, scalar_prefetch = 0 : i64, scratch_operands = 0 : i64, tpu.core_type = #tpu.core_type<tc>, window_params = [{transform_indices = @transform_0, window_bounds = array<i64: 16, 32>}, {pipeline_mode = #tpu.pipeline_mode<synchronous>, transform_indices = @transform_1, window_bounds = array<i64: 8, 32>}, {pipeline_mode = #tpu.pipeline_mode<synchronous>, transform_indices = @transform_2, window_bounds = array<i64: 8, 32>}, {pipeline_mode = #tpu.pipeline_mode<synchronous>, transform_indices = @transform_3, window_bounds = array<i64: 32, 32>}, {pipeline_mode = #tpu.pipeline_mode<synchronous>, transform_indices = @transform_4, window_bounds = array<i64: 32, 32>}, {pipeline_mode = #tpu.pipeline_mode<synchronous>, transform_indices = @transform_5, window_bounds = array<i64: 1, 64>}, {transform_indices = @transform_6, window_bounds = array<i64: 16, 32>}]} {
    %c0 = arith.constant 0 : index
    %c0_0 = arith.constant 0 : index
    %0 = vector.load %arg1[%c0, %c0_0] : memref<16x32xf32, #tpu.memory_space<vmem>>, vector<16x32xf32>
    %cst = arith.constant dense<0.000000e+00> : vector<16xf32>
    %1 = vector.multi_reduction <add>, %0, %cst [1] : vector<16x32xf32> to vector<16xf32>
    %2 = vector.shape_cast %1 : vector<16xf32> to vector<16x1xf32>
    %cst_1 = arith.constant 3.200000e+01 : f32
    %3 = vector.broadcast %cst_1 : f32 to vector<16x1xf32>
    %4 = arith.divf %2, %3 : vector<16x1xf32>
    %5 = vector.broadcast %4 : vector<16x1xf32> to vector<16x32xf32>
    %6 = arith.subf %0, %5 : vector<16x32xf32>
    %7 = arith.mulf %6, %6 : vector<16x32xf32>
    %cst_2 = arith.constant dense<0.000000e+00> : vector<16xf32>
    %8 = vector.multi_reduction <add>, %7, %cst_2 [1] : vector<16x32xf32> to vector<16xf32>
    %9 = vector.shape_cast %8 : vector<16xf32> to vector<16x1xf32>
    %cst_3 = arith.constant 3.200000e+01 : f32
    %10 = vector.broadcast %cst_3 : f32 to vector<16x1xf32>
    %11 = arith.divf %9, %10 : vector<16x1xf32>
    %12 = vector.broadcast %4 : vector<16x1xf32> to vector<16x32xf32>
    %13 = arith.subf %0, %12 : vector<16x32xf32>
    %cst_4 = arith.constant 9.99999974E-6 : f32
    %14 = vector.broadcast %cst_4 : f32 to vector<16x1xf32>
    %15 = arith.addf %11, %14 : vector<16x1xf32>
    %16 = math.rsqrt %15 : vector<16x1xf32>
    %17 = vector.broadcast %16 : vector<16x1xf32> to vector<16x32xf32>
    %18 = arith.mulf %13, %17 : vector<16x32xf32>
    %c0_5 = arith.constant 0 : index
    %c0_6 = arith.constant 0 : index
    %19 = vector.load %arg4[%c0_5, %c0_6] : memref<32x32xf32, #tpu.memory_space<vmem>>, vector<32x32xf32>
    %cst_7 = arith.constant dense<0.000000e+00> : vector<16x32xf32>
    %20 = tpu.matmul %18, %19, %cst_7 {dimension_numbers = #tpu.dot_dimension_numbers<[1], [0], [0], [1], [0, 0, 1, 1], [], []>} : vector<16x32xf32>, vector<32x32xf32>, vector<16x32xf32> -> vector<16x32xf32>
    %c0_8 = arith.constant 0 : index
    %c0_9 = arith.constant 0 : index
    %21 = vector.load %arg6[%c0_8, %c0_9] : memref<1x64xf32, #tpu.memory_space<vmem>>, vector<1x32xf32>
    %22 = vector.broadcast %21 : vector<1x32xf32> to vector<16x32xf32>
    %23 = arith.addf %20, %22 : vector<16x32xf32>
    %c0_10 = arith.constant 0 : index
    %c0_11 = arith.constant 0 : index
    %24 = vector.load %arg2[%c0_10, %c0_11] : memref<8x32xf32, #tpu.memory_space<vmem>>, vector<8x32xf32>
    %c0_12 = arith.constant 0 : index
    %c0_13 = arith.constant 0 : index
    %25 = vector.load %arg3[%c0_12, %c0_13] : memref<8x32xf32, #tpu.memory_space<vmem>>, vector<8x32xf32>
    %26 = vector.extract_strided_slice %23 {offsets = [0, 0], sizes = [16, 16], strides = [1, 1]} : vector<16x32xf32> to vector<16x16xf32>
    %27 = vector.extract_strided_slice %24 {offsets = [0, 0], sizes = [8, 16], strides = [1, 1]} : vector<8x32xf32> to vector<8x16xf32>
    %cst_14 = arith.constant dense<0.000000e+00> : vector<16x8xf32>
    %28 = tpu.matmul %26, %27, %cst_14 {dimension_numbers = #tpu.dot_dimension_numbers<[1], [1], [0], [0], [0, 0, 1, 0], [], []>} : vector<16x16xf32>, vector<8x16xf32>, vector<16x8xf32> -> vector<16x8xf32>
    %cst_15 = arith.constant dense<0xFF800000> : vector<16xf32>
    %29 = vector.multi_reduction <maximumf>, %28, %cst_15 [1] : vector<16x8xf32> to vector<16xf32>
    %30 = vector.shape_cast %29 : vector<16xf32> to vector<16x1xf32>
    %31 = vector.broadcast %30 : vector<16x1xf32> to vector<16x8xf32>
    %32 = arith.subf %28, %31 : vector<16x8xf32>
    %33 = math.exp %32 : vector<16x8xf32>
    %cst_16 = arith.constant dense<0.000000e+00> : vector<16xf32>
    %34 = vector.multi_reduction <add>, %33, %cst_16 [1] : vector<16x8xf32> to vector<16xf32>
    %35 = vector.shape_cast %34 : vector<16xf32> to vector<16x1xf32>
    %36 = tpu.reciprocal %35 {approx = true} : vector<16x1xf32> -> vector<16x1xf32>
    %37 = vector.broadcast %36 : vector<16x1xf32> to vector<16x8xf32>
    %38 = arith.mulf %33, %37 : vector<16x8xf32>
    %39 = vector.extract_strided_slice %25 {offsets = [0, 0], sizes = [8, 16], strides = [1, 1]} : vector<8x32xf32> to vector<8x16xf32>
    %cst_17 = arith.constant dense<0.000000e+00> : vector<16x16xf32>
    %40 = tpu.matmul %38, %39, %cst_17 {dimension_numbers = #tpu.dot_dimension_numbers<[1], [0], [0], [1], [0, 0, 1, 1], [], []>} : vector<16x8xf32>, vector<8x16xf32>, vector<16x16xf32> -> vector<16x16xf32>
    %41 = vector.extract_strided_slice %23 {offsets = [0, 16], sizes = [16, 16], strides = [1, 1]} : vector<16x32xf32> to vector<16x16xf32>
    %42 = vector.extract_strided_slice %24 {offsets = [0, 16], sizes = [8, 16], strides = [1, 1]} : vector<8x32xf32> to vector<8x16xf32>
    %cst_18 = arith.constant dense<0.000000e+00> : vector<16x8xf32>
    %43 = tpu.matmul %41, %42, %cst_18 {dimension_numbers = #tpu.dot_dimension_numbers<[1], [1], [0], [0], [0, 0, 1, 0], [], []>} : vector<16x16xf32>, vector<8x16xf32>, vector<16x8xf32> -> vector<16x8xf32>
    %cst_19 = arith.constant dense<0xFF800000> : vector<16xf32>
    %44 = vector.multi_reduction <maximumf>, %43, %cst_19 [1] : vector<16x8xf32> to vector<16xf32>
    %45 = vector.shape_cast %44 : vector<16xf32> to vector<16x1xf32>
    %46 = vector.broadcast %45 : vector<16x1xf32> to vector<16x8xf32>
    %47 = arith.subf %43, %46 : vector<16x8xf32>
    %48 = math.exp %47 : vector<16x8xf32>
    %cst_20 = arith.constant dense<0.000000e+00> : vector<16xf32>
    %49 = vector.multi_reduction <add>, %48, %cst_20 [1] : vector<16x8xf32> to vector<16xf32>
    %50 = vector.shape_cast %49 : vector<16xf32> to vector<16x1xf32>
    %51 = tpu.reciprocal %50 {approx = true} : vector<16x1xf32> -> vector<16x1xf32>
    %52 = vector.broadcast %51 : vector<16x1xf32> to vector<16x8xf32>
    %53 = arith.mulf %48, %52 : vector<16x8xf32>
    %54 = vector.extract_strided_slice %25 {offsets = [0, 16], sizes = [8, 16], strides = [1, 1]} : vector<8x32xf32> to vector<8x16xf32>
    %cst_21 = arith.constant dense<0.000000e+00> : vector<16x16xf32>
    %55 = tpu.matmul %53, %54, %cst_21 {dimension_numbers = #tpu.dot_dimension_numbers<[1], [0], [0], [1], [0, 0, 1, 1], [], []>} : vector<16x8xf32>, vector<8x16xf32>, vector<16x16xf32> -> vector<16x16xf32>
    %56 = tpu.concatenate %40, %55 in 1 : vector<16x16xf32>, vector<16x16xf32> -> vector<16x32xf32>
    %c0_22 = arith.constant 0 : index
    %c0_23 = arith.constant 0 : index
    %57 = vector.load %arg5[%c0_22, %c0_23] : memref<32x32xf32, #tpu.memory_space<vmem>>, vector<32x32xf32>
    %cst_24 = arith.constant dense<0.000000e+00> : vector<16x32xf32>
    %58 = tpu.matmul %56, %57, %cst_24 {dimension_numbers = #tpu.dot_dimension_numbers<[1], [0], [0], [1], [0, 0, 1, 1], [], []>} : vector<16x32xf32>, vector<32x32xf32>, vector<16x32xf32> -> vector<16x32xf32>
    %59 = arith.addf %0, %58 : vector<16x32xf32>
    %c0_25 = arith.constant 0 : index
    %c32 = arith.constant 32 : index
    %60 = vector.load %arg6[%c0_25, %c32] : memref<1x64xf32, #tpu.memory_space<vmem>>, vector<1x32xf32>
    %61 = vector.broadcast %60 : vector<1x32xf32> to vector<16x32xf32>
    %62 = arith.addf %59, %61 : vector<16x32xf32>
    %c0_26 = arith.constant 0 : index
    %c0_27 = arith.constant 0 : index
    %63 = vector.load %arg7[%c0_26, %c0_27] : memref<16x32xf32, #tpu.memory_space<vmem>>, vector<16x32xf32>
    tpu.vector_store %arg7[%c0_26, %c0_27], %62 {strides = array<i32>} : memref<16x32xf32, #tpu.memory_space<vmem>>, vector<16x32xf32>,
    return
  }
  func.func @transform_0(%arg0: i32) -> (i32, i32) {
    %c0_i32 = arith.constant 0 : i32
    %c0_i32_0 = arith.constant 0 : i32
    return %arg0, %c0_i32 : i32, i32
  }
  func.func @transform_1(%arg0: i32) -> (i32, i32) {
    %c0_i32 = arith.constant 0 : i32
    %c0_i32_0 = arith.constant 0 : i32
    %c0_i32_1 = arith.constant 0 : i32
    return %c0_i32, %c0_i32_0 : i32, i32
  }
  func.func @transform_2(%arg0: i32) -> (i32, i32) {
    %c0_i32 = arith.constant 0 : i32
    %c0_i32_0 = arith.constant 0 : i32
    %c0_i32_1 = arith.constant 0 : i32
    return %c0_i32, %c0_i32_0 : i32, i32
  }
  func.func @transform_3(%arg0: i32) -> (i32, i32) {
    %c0_i32 = arith.constant 0 : i32
    %c0_i32_0 = arith.constant 0 : i32
    %c0_i32_1 = arith.constant 0 : i32
    return %c0_i32, %c0_i32_0 : i32, i32
  }
  func.func @transform_4(%arg0: i32) -> (i32, i32) {
    %c0_i32 = arith.constant 0 : i32
    %c0_i32_0 = arith.constant 0 : i32
    %c0_i32_1 = arith.constant 0 : i32
    return %c0_i32, %c0_i32_0 : i32, i32
  }
  func.func @transform_5(%arg0: i32) -> (i32, i32) {
    %c0_i32 = arith.constant 0 : i32
    %c0_i32_0 = arith.constant 0 : i32
    %c0_i32_1 = arith.constant 0 : i32
    return %c0_i32, %c0_i32_0 : i32, i32
  }
  func.func @transform_6(%arg0: i32) -> (i32, i32) {
    %c0_i32 = arith.constant 0 : i32
    %c0_i32_0 = arith.constant 0 : i32
    return %arg0, %c0_i32 : i32, i32
  }
}

</mosaic_0001>

<llo_original>
// kernel: context_module_forward.1
$region0: #{context_module_forward.1}
  #allocation0 [shape = 'u32[]', space=smem, size = 0x4, offset = 0x4, fixed_abs, tag = 'smem constant byte address 0x4 - core index']
  #allocation1 [shape = 'u32[144,128]{1,0:T(1,128)}', space=vmem, size = 0x12000, scoped, tag = 'internal scratch']
  %s0 = inlined_call_operand.vmem [shape: f32[16,32], index: 0, kind: input, shape index: {}]
  %s1 = inlined_call_operand.vmem [shape: f32[8,32], index: 1, kind: input, shape index: {}]
  %s2 = inlined_call_operand.vmem [shape: f32[8,32], index: 2, kind: input, shape index: {}]
  %s3 = inlined_call_operand.vmem [shape: f32[32,32], index: 3, kind: input, shape index: {}]
  %s4 = inlined_call_operand.vmem [shape: f32[32,32], index: 4, kind: input, shape index: {}]
  %s5 = inlined_call_operand.vmem [shape: f32[1,64], index: 5, kind: input, shape index: {}]
  %s6 = inlined_call_operand.vmem [shape: f32[16,32], index: 6, kind: output, shape index: {}]
  %s7 = sld [smem:[#allocation0]]
  $region34: #{context_module_forward.1} parent=0
    _
  %s9 = ssub.s32 1, %s7
  %s10 = scalar_select 0, %s9, %s7
  // Predicated region
  $region2: #{context_module_forward.1} parent=0 // pred_check
    _
  $region3: #{context_module_forward.1} parent=0 // pred_check_branch
    %12 = sbr.rel (0) target = $region5
  $region4: #{context_module_forward.1} parent=0 // pred_region
    _
  $region5: #{context_module_forward.1} parent=0 // pred_fallthru
    _
  // Predicated region
  $region6: #{context_module_forward.1} parent=0 // pred_check
    _
  $region7: #{context_module_forward.1} parent=0 // pred_check_branch
    %14 = sbr.rel (0) target = $region9
  $region8: #{context_module_forward.1} parent=0 // pred_region
    _
  $region9: #{context_module_forward.1} parent=0 // pred_fallthru
    _
  // Predicated region
  $region10: #{context_module_forward.1} parent=0 // pred_check
    _
  $region11: #{context_module_forward.1} parent=0 // pred_check_branch
    %16 = sbr.rel (0) target = $region13
  $region12: #{context_module_forward.1} parent=0 // pred_region
    _
  $region13: #{context_module_forward.1} parent=0 // pred_fallthru
    _
  // Predicated region
  $region14: #{context_module_forward.1} parent=0 // pred_check
    _
  $region15: #{context_module_forward.1} parent=0 // pred_check_branch
    %18 = sbr.rel (0) target = $region17
  $region16: #{context_module_forward.1} parent=0 // pred_region
    _
  $region17: #{context_module_forward.1} parent=0 // pred_fallthru
    _
  // Predicated region
  $region18: #{context_module_forward.1} parent=0 // pred_check
    _
  $region19: #{context_module_forward.1} parent=0 // pred_check_branch
    %20 = sbr.rel (0) target = $region21
  $region20: #{context_module_forward.1} parent=0 // pred_region
    _
  $region21: #{context_module_forward.1} parent=0 // pred_fallthru
    _
  // Predicated region
  $region22: #{context_module_forward.1} parent=0 // pred_check
    _
  $region23: #{context_module_forward.1} parent=0 // pred_check_branch
    %22 = sbr.rel (0) target = $region25
  $region24: #{context_module_forward.1} parent=0 // pred_region
    _
  $region25: #{context_module_forward.1} parent=0 // pred_fallthru
    _
  %v23 = vld [vmem:[%s0] sm:$0xff]
  %v24 = vld [vmem:[%s0 + $0x8] sm:$0xff]
  %vm25 = vcmask 261120
  %v26 = vsel %vm25, %v23, 0.0
  %27 = vadd.xlane.f32.xlu0 %v26
  %v28 = vpop.xlane.xlu0 %27
  %v29 = vsel %vm25, %v24, 0.0
  %30 = vadd.xlane.f32.xlu0 %v29
  %v31 = vpop.xlane.xlu0 %30
  %v32 = vrcp.pop 32.0
  %v33 = vmul.f32 %v28, %v32
  %v34 = vmul.f32 %v31, %v32
  %v35 = vsub.f32 %v23, %v33
  %v36 = vsub.f32 %v24, %v34
  %v37 = vmul.f32 %v35, %v35
  %v38 = vmul.f32 %v36, %v36
  %v39 = vsel %vm25, %v37, 0.0
  %40 = vadd.xlane.f32.xlu0 %v39
  %v41 = vpop.xlane.xlu0 %40
  %v42 = vsel %vm25, %v38, 0.0
  %43 = vadd.xlane.f32.xlu0 %v42
  %v44 = vpop.xlane.xlu0 %43
  %v45 = vmul.f32 %v41, %v32
  %v46 = vmul.f32 %v44, %v32
  %v47 = vadd.f32 %v45, 1e-05
  %v48 = vadd.f32 %v46, 1e-05
  %v49 = vrsqrt.pop %v47
  %v50 = vrsqrt.pop %v48
  %v51 = vmul.f32 %v35, %v49
  %v52 = vmul.f32 %v36, %v50
  %v53 = vld [vmem:[%s3] sm:$0xff]
  %v54 = vld [vmem:[%s3 + $0x8] sm:$0xff]
  %v55 = vld [vmem:[%s3 + $0x10] sm:$0xff]
  %v56 = vld [vmem:[%s3 + $0x18] sm:$0xff]
  %v57 = vld [vmem:[%s5] sm:$0x1]
  %v59 = vlaneseq
  %v60 = vshrl.u32 %v59, 7
  %v61 = vsub.s32 0, %v60
  %v62 = vrot.slane %v57, %v61
  %v65 = vsel %vm25, %v51, 0
  %v68 = vsel %vm25, %v52, 0
  %70 = vmatprep.subr.mxu0 0.0
  %71 = vmatpush1.msra.mxu0 %v53
  %72 = vmatprep.subr.mxu0 0.0
  %73 = vmatpush1.msra.mxu0 %v54
  %74 = vmatprep.subr.mxu0 0.0
  %75 = vmatpush1.msra.mxu0 %v55
  %76 = vmatprep.subr.mxu0 0.0
  %77 = vmatpush1.msra.mxu0 %v56
  %78 = vmatprep.subr.mxu0 0.0
  %79 = vmatpush1.msra.mxu0 0.0
  %80 = vmatprep.subr.mxu0 0.0
  %81 = vmatpush1.msra.mxu0 0.0
  %82 = vmatprep.subr.mxu0 0.0
  %83 = vmatpush1.msra.mxu0 0.0
  %84 = vmatprep.subr.mxu0 0.0
  %85 = vmatpush1.msra.mxu0 0.0
  %86 = vmatprep.subr.mxu0 0.0
  %87 = vmatpush1.msra.mxu0 0.0
  %88 = vmatprep.subr.mxu0 0.0
  %89 = vmatpush1.msra.mxu0 0.0
  %90 = vmatprep.subr.mxu0 0.0
  %91 = vmatpush1.msra.mxu0 0.0
  %92 = vmatprep.subr.mxu0 0.0
  %93 = vmatpush1.msra.mxu0 0.0
  %94 = vmatprep.subr.mxu0 0.0
  %95 = vmatpush1.msra.mxu0 0.0
  %96 = vmatprep.subr.mxu0 0.0
  %97 = vmatpush1.msra.mxu0 0.0
  %98 = vmatprep.subr.mxu0 0.0
  %99 = vmatpush1.msra.mxu0 0.0
  %100 = vmatprep.subr.mxu0 0.0
  %101 = vmatpush1.msra.mxu0 0.0
  %102 = vmatprep.subr.mxu0 0.0
  %103 = vmatpush1.msra.mxu0 0.0
  %104 = vmatprep.subr.mxu0 0.0
  %105 = vmatpush1.msra.mxu0 0.0
  %106 = vmatprep.subr.mxu0 0.0
  %107 = vmatpush1.msra.mxu0 0.0
  %108 = vmatprep.subr.mxu0 0.0
  %109 = vmatpush1.msra.mxu0 0.0
  %110 = vmatprep.subr.mxu0 0.0
  %111 = vmatpush1.msra.mxu0 0.0
  %112 = vmatprep.subr.mxu0 0.0
  %113 = vmatpush1.msra.mxu0 0.0
  %114 = vmatprep.subr.mxu0 0.0
  %115 = vmatpush1.msra.mxu0 0.0
  %116 = vmatprep.subr.mxu0 0.0
  %117 = vmatpush1.msra.mxu0 0.0
  %118 = vmatprep.subr.mxu0 0.0
  %119 = vmatpush1.msra.mxu0 0.0
  %120 = vmatprep.subr.mxu0 0.0
  %121 = vmatpush1.msra.mxu0 0.0
  %122 = vmatprep.subr.mxu0 0.0
  %123 = vmatpush1.msra.mxu0 0.0
  %124 = vmatprep.subr.mxu0 0.0
  %125 = vmatpush1.msra.mxu0 0.0
  %126 = vmatprep.subr.mxu0 0.0
  %127 = vmatpush1.msra.mxu0 0.0
  %128 = vmatprep.subr.mxu0 0.0
  %129 = vmatpush1.msra.mxu0 0.0
  %130 = vmatprep.subr.mxu0 0.0
  %131 = vmatpush1.msra.mxu0 0.0
  %132 = vmatprep.subr.mxu0 0.0
  %133 = vmatpush1.msra.mxu0 0.0
  %134 = vmatprep.mubr.f32.mxu0 0.0
  %135 = vmatmul.mubr.f32.gmra.mrb[0].mxu0 %v65
  %v136 = vpop.f32.mrb[0].mxu0
  %v137 = vadd.f32 %v62, %v136
  %v138 = vpop.f32.mrb[0].mxu0
  %139 = vmatprep.mubr.f32.mxu0 0.0
  %140 = vmatmul.mubr.f32.gmra.mrb[0].mxu0 %v68
  %v141 = vpop.f32.mrb[0].mxu0
  %v142 = vadd.f32 %v62, %v141
  %v143 = vpop.f32.mrb[0].mxu0
  %144 = vdwg.mxu0
  %v145 = vld [vmem:[%s1] sm:$0xff]
  %v146 = vld [vmem:[%s2] sm:$0xff]
  %vm147 = vcmask 130048
  %v149 = vsel %vm147, %v137, 0
  %v152 = vsel %vm147, %v142, 0
  %v155 = vsel %vm147, %v145, 0
  %157 = vmatprep.subr.mxu0 0.0
  %158 = vmatpush1.xpose.msra.mxu0 %v155
  %159 = vmatprep.subr.mxu0 0.0
  %160 = vmatpush1.xpose.msra.mxu0 0.0
  %161 = vmatprep.subr.mxu0 0.0
  %162 = vmatpush1.xpose.msra.mxu0 0.0
  %163 = vmatprep.subr.mxu0 0.0
  %164 = vmatpush1.xpose.msra.mxu0 0.0
  %165 = vmatprep.subr.mxu0 0.0
  %166 = vmatpush1.xpose.msra.mxu0 0.0
  %167 = vmatprep.subr.mxu0 0.0
  %168 = vmatpush1.xpose.msra.mxu0 0.0
  %169 = vmatprep.subr.mxu0 0.0
  %170 = vmatpush1.xpose.msra.mxu0 0.0
  %171 = vmatprep.subr.mxu0 0.0
  %172 = vmatpush1.xpose.msra.mxu0 0.0
  %173 = vmatprep.subr.mxu0 0.0
  %174 = vmatpush1.xpose.msra.mxu0 0.0
  %175 = vmatprep.subr.mxu0 0.0
  %176 = vmatpush1.xpose.msra.mxu0 0.0
  %177 = vmatprep.subr.mxu0 0.0
  %178 = vmatpush1.xpose.msra.mxu0 0.0
  %179 = vmatprep.subr.mxu0 0.0
  %180 = vmatpush1.xpose.msra.mxu0 0.0
  %181 = vmatprep.subr.mxu0 0.0
  %182 = vmatpush1.xpose.msra.mxu0 0.0
  %183 = vmatprep.subr.mxu0 0.0
  %184 = vmatpush1.xpose.msra.mxu0 0.0
  %185 = vmatprep.subr.mxu0 0.0
  %186 = vmatpush1.xpose.msra.mxu0 0.0
  %187 = vmatprep.subr.mxu0 0.0
  %188 = vmatpush1.xpose.msra.mxu0 0.0
  %189 = vmatprep.subr.mxu0 0.0
  %190 = vmatpush1.xpose.msra.mxu0 0.0
  %191 = vmatprep.subr.mxu0 0.0
  %192 = vmatpush1.xpose.msra.mxu0 0.0
  %193 = vmatprep.subr.mxu0 0.0
  %194 = vmatpush1.xpose.msra.mxu0 0.0
  %195 = vmatprep.subr.mxu0 0.0
  %196 = vmatpush1.xpose.msra.mxu0 0.0
  %197 = vmatprep.subr.mxu0 0.0
  %198 = vmatpush1.xpose.msra.mxu0 0.0
  %199 = vmatprep.subr.mxu0 0.0
  %200 = vmatpush1.xpose.msra.mxu0 0.0
  %201 = vmatprep.subr.mxu0 0.0
  %202 = vmatpush1.xpose.msra.mxu0 0.0
  %203 = vmatprep.subr.mxu0 0.0
  %204 = vmatpush1.xpose.msra.mxu0 0.0
  %205 = vmatprep.subr.mxu0 0.0
  %206 = vmatpush1.xpose.msra.mxu0 0.0
  %207 = vmatprep.subr.mxu0 0.0
  %208 = vmatpush1.xpose.msra.mxu0 0.0
  %209 = vmatprep.subr.mxu0 0.0
  %210 = vmatpush1.xpose.msra.mxu0 0.0
  %211 = vmatprep.subr.mxu0 0.0
  %212 = vmatpush1.xpose.msra.mxu0 0.0
  %213 = vmatprep.subr.mxu0 0.0
  %214 = vmatpush1.xpose.msra.mxu0 0.0
  %215 = vmatprep.subr.mxu0 0.0
  %216 = vmatpush1.xpose.msra.mxu0 0.0
  %217 = vmatprep.subr.mxu0 0.0
  %218 = vmatpush1.xpose.msra.mxu0 0.0
  %219 = vmatprep.subr.mxu0 0.0
  %220 = vmatpush1.xpose.msra.mxu0 0.0
  %221 = vmatprep.mubr.f32.mxu0 0.0
  %222 = vmatmul.mubr.f32.gmra.mrb[0].mxu0 %v149
  %v223 = vpop.f32.mrb[0].mxu0
  %v224 = vadd.f32 0.0, %v223
  %v225 = vpop.f32.mrb[0].mxu0
  %226 = vmatprep.mubr.f32.mxu0 0.0
  %227 = vmatmul.mubr.f32.gmra.mrb[0].mxu0 %v152
  %v228 = vpop.f32.mrb[0].mxu0
  %v229 = vadd.f32 0.0, %v228
  %v230 = vpop.f32.mrb[0].mxu0
  %231 = vdwg.mxu0
  %vm232 = vcmask 64512
  %v233 = vsel %vm232, %v224, -inf
  %234 = vmax.xlane.f32.xlu0 %v233
  %v235 = vpop.xlane.xlu0 %234
  %v236 = vsel %vm232, %v229, -inf
  %237 = vmax.xlane.f32.xlu0 %v236
  %v238 = vpop.xlane.xlu0 %237
  %v239 = vsub.f32 %v224, %v235
  %v240 = vsub.f32 %v229, %v238
  %v241 = vmul.f32 %v239, 1.442695
  %v242 = vpow.pop %v241
  %v243 = vmul.f32 %v240, 1.442695
  %v244 = vpow.pop %v243
  %v245 = vsel %vm232, %v242, 0.0
  %246 = vadd.xlane.f32.xlu0 %v245
  %v247 = vpop.xlane.xlu0 %246
  %v248 = vsel %vm232, %v244, 0.0
  %249 = vadd.xlane.f32.xlu0 %v248
  %v250 = vpop.xlane.xlu0 %249
  %v251 = vrcp.pop %v247
  %v252 = vrcp.pop %v250
  %v253 = vmul.f32 %v242, %v251
  %v254 = vmul.f32 %v244, %v252
  %v256 = vsel %vm232, %v253, 0
  %v259 = vsel %vm232, %v254, 0
  %261 = vmatprep.subr.mxu0 0.0
  %262 = vmatpush1.msra.mxu0 %v146
  %263 = vmatprep.subr.mxu0 0.0
  %264 = vmatpush1.msra.mxu0 0.0
  %265 = vmatprep.subr.mxu0 0.0
  %266 = vmatpush1.msra.mxu0 0.0
  %267 = vmatprep.subr.mxu0 0.0
  %268 = vmatpush1.msra.mxu0 0.0
  %269 = vmatprep.subr.mxu0 0.0
  %270 = vmatpush1.msra.mxu0 0.0
  %271 = vmatprep.subr.mxu0 0.0
  %272 = vmatpush1.msra.mxu0 0.0
  %273 = vmatprep.subr.mxu0 0.0
  %274 = vmatpush1.msra.mxu0 0.0
  %275 = vmatprep.subr.mxu0 0.0
  %276 = vmatpush1.msra.mxu0 0.0
  %277 = vmatprep.subr.mxu0 0.0
  %278 = vmatpush1.msra.mxu0 0.0
  %279 = vmatprep.subr.mxu0 0.0
  %280 = vmatpush1.msra.mxu0 0.0
  %281 = vmatprep.subr.mxu0 0.0
  %282 = vmatpush1.msra.mxu0 0.0
  %283 = vmatprep.subr.mxu0 0.0
  %284 = vmatpush1.msra.mxu0 0.0
  %285 = vmatprep.subr.mxu0 0.0
  %286 = vmatpush1.msra.mxu0 0.0
  %287 = vmatprep.subr.mxu0 0.0
  %288 = vmatpush1.msra.mxu0 0.0
  %289 = vmatprep.subr.mxu0 0.0
  %290 = vmatpush1.msra.mxu0 0.0
  %291 = vmatprep.subr.mxu0 0.0
  %292 = vmatpush1.msra.mxu0 0.0
  %293 = vmatprep.subr.mxu0 0.0
  %294 = vmatpush1.msra.mxu0 0.0
  %295 = vmatprep.subr.mxu0 0.0
  %296 = vmatpush1.msra.mxu0 0.0
  %297 = vmatprep.subr.mxu0 0.0
  %298 = vmatpush1.msra.mxu0 0.0
  %299 = vmatprep.subr.mxu0 0.0
  %300 = vmatpush1.msra.mxu0 0.0
  %301 = vmatprep.subr.mxu0 0.0
  %302 = vmatpush1.msra.mxu0 0.0
  %303 = vmatprep.subr.mxu0 0.0
  %304 = vmatpush1.msra.mxu0 0.0
  %305 = vmatprep.subr.mxu0 0.0
  %306 = vmatpush1.msra.mxu0 0.0
  %307 = vmatprep.subr.mxu0 0.0
  %308 = vmatpush1.msra.mxu0 0.0
  %309 = vmatprep.subr.mxu0 0.0
  %310 = vmatpush1.msra.mxu0 0.0
  %311 = vmatprep.subr.mxu0 0.0
  %312 = vmatpush1.msra.mxu0 0.0
  %313 = vmatprep.subr.mxu0 0.0
  %314 = vmatpush1.msra.mxu0 0.0
  %315 = vmatprep.subr.mxu0 0.0
  %316 = vmatpush1.msra.mxu0 0.0
  %317 = vmatprep.subr.mxu0 0.0
  %318 = vmatpush1.msra.mxu0 0.0
  %319 = vmatprep.subr.mxu0 0.0
  %320 = vmatpush1.msra.mxu0 0.0
  %321 = vmatprep.subr.mxu0 0.0
  %322 = vmatpush1.msra.mxu0 0.0
  %323 = vmatprep.subr.mxu0 0.0
  %324 = vmatpush1.msra.mxu0 0.0
  %325 = vmatprep.mubr.f32.mxu0 0.0
  %326 = vmatmul.mubr.f32.gmra.mrb[0].mxu0 %v256
  %v327 = vpop.f32.mrb[0].mxu0
  %v328 = vadd.f32 0.0, %v327
  %v329 = vpop.f32.mrb[0].mxu0
  %330 = vmatprep.mubr.f32.mxu0 0.0
  %331 = vmatmul.mubr.f32.gmra.mrb[0].mxu0 %v259
  %v332 = vpop.f32.mrb[0].mxu0
  %v333 = vadd.f32 0.0, %v332
  %v334 = vpop.f32.mrb[0].mxu0
  %335 = vdwg.mxu0
  %336 = vrot.lane.b32.xlu0 %v137, 112
  %v337 = vpop.permute.xlu0 %336
  %338 = vrot.lane.b32.xlu0 %v142, 112
  %v339 = vpop.permute.xlu0 %338
  %340 = vrot.lane.b32.xlu0 %v145, 112
  %v341 = vpop.permute.xlu0 %340
  %v342 = vsel %vm147, %v337, 0
  %v344 = vsel %vm147, %v339, 0
  %v346 = vsel %vm147, %v341, 0
  %348 = vmatprep.subr.mxu0 0.0
  %349 = vmatpush1.xpose.msra.mxu0 %v346
  %350 = vmatprep.subr.mxu0 0.0
  %351 = vmatpush1.xpose.msra.mxu0 0.0
  %352 = vmatprep.subr.mxu0 0.0
  %353 = vmatpush1.xpose.msra.mxu0 0.0
  %354 = vmatprep.subr.mxu0 0.0
  %355 = vmatpush1.xpose.msra.mxu0 0.0
  %356 = vmatprep.subr.mxu0 0.0
  %357 = vmatpush1.xpose.msra.mxu0 0.0
  %358 = vmatprep.subr.mxu0 0.0
  %359 = vmatpush1.xpose.msra.mxu0 0.0
  %360 = vmatprep.subr.mxu0 0.0
  %361 = vmatpush1.xpose.msra.mxu0 0.0
  %362 = vmatprep.subr.mxu0 0.0
  %363 = vmatpush1.xpose.msra.mxu0 0.0
  %364 = vmatprep.subr.mxu0 0.0
  %365 = vmatpush1.xpose.msra.mxu0 0.0
  %366 = vmatprep.subr.mxu0 0.0
  %367 = vmatpush1.xpose.msra.mxu0 0.0
  %368 = vmatprep.subr.mxu0 0.0
  %369 = vmatpush1.xpose.msra.mxu0 0.0
  %370 = vmatprep.subr.mxu0 0.0
  %371 = vmatpush1.xpose.msra.mxu0 0.0
  %372 = vmatprep.subr.mxu0 0.0
  %373 = vmatpush1.xpose.msra.mxu0 0.0
  %374 = vmatprep.subr.mxu0 0.0
  %375 = vmatpush1.xpose.msra.mxu0 0.0
  %376 = vmatprep.subr.mxu0 0.0
  %377 = vmatpush1.xpose.msra.mxu0 0.0
  %378 = vmatprep.subr.mxu0 0.0
  %379 = vmatpush1.xpose.msra.mxu0 0.0
  %380 = vmatprep.subr.mxu0 0.0
  %381 = vmatpush1.xpose.msra.mxu0 0.0
  %382 = vmatprep.subr.mxu0 0.0
  %383 = vmatpush1.xpose.msra.mxu0 0.0
  %384 = vmatprep.subr.mxu0 0.0
  %385 = vmatpush1.xpose.msra.mxu0 0.0
  %386 = vmatprep.subr.mxu0 0.0
  %387 = vmatpush1.xpose.msra.mxu0 0.0
  %388 = vmatprep.subr.mxu0 0.0
  %389 = vmatpush1.xpose.msra.mxu0 0.0
  %390 = vmatprep.subr.mxu0 0.0
  %391 = vmatpush1.xpose.msra.mxu0 0.0
  %392 = vmatprep.subr.mxu0 0.0
  %393 = vmatpush1.xpose.msra.mxu0 0.0
  %394 = vmatprep.subr.mxu0 0.0
  %395 = vmatpush1.xpose.msra.mxu0 0.0
  %396 = vmatprep.subr.mxu0 0.0
  %397 = vmatpush1.xpose.msra.mxu0 0.0
  %398 = vmatprep.subr.mxu0 0.0
  %399 = vmatpush1.xpose.msra.mxu0 0.0
  %400 = vmatprep.subr.mxu0 0.0
  %401 = vmatpush1.xpose.msra.mxu0 0.0
  %402 = vmatprep.subr.mxu0 0.0
  %403 = vmatpush1.xpose.msra.mxu0 0.0
  %404 = vmatprep.subr.mxu0 0.0
  %405 = vmatpush1.xpose.msra.mxu0 0.0
  %406 = vmatprep.subr.mxu0 0.0
  %407 = vmatpush1.xpose.msra.mxu0 0.0
  %408 = vmatprep.subr.mxu0 0.0
  %409 = vmatpush1.xpose.msra.mxu0 0.0
  %410 = vmatprep.subr.mxu0 0.0
  %411 = vmatpush1.xpose.msra.mxu0 0.0
  %412 = vmatprep.mubr.f32.mxu0 0.0
  %413 = vmatmul.mubr.f32.gmra.mrb[0].mxu0 %v342
  %v414 = vpop.f32.mrb[0].mxu0
  %v415 = vadd.f32 0.0, %v414
  %v416 = vpop.f32.mrb[0].mxu0
  %417 = vmatprep.mubr.f32.mxu0 0.0
  %418 = vmatmul.mubr.f32.gmra.mrb[0].mxu0 %v344
  %v419 = vpop.f32.mrb[0].mxu0
  %v420 = vadd.f32 0.0, %v419
  %v421 = vpop.f32.mrb[0].mxu0
  %422 = vdwg.mxu0
  %v423 = vsel %vm232, %v415, -inf
  %424 = vmax.xlane.f32.xlu0 %v423
  %v425 = vpop.xlane.xlu0 %424
  %v426 = vsel %vm232, %v420, -inf
  %427 = vmax.xlane.f32.xlu0 %v426
  %v428 = vpop.xlane.xlu0 %427
  %v429 = vsub.f32 %v415, %v425
  %v430 = vsub.f32 %v420, %v428
  %v431 = vmul.f32 %v429, 1.442695
  %v432 = vpow.pop %v431
  %v433 = vmul.f32 %v430, 1.442695
  %v434 = vpow.pop %v433
  %v435 = vsel %vm232, %v432, 0.0
  %436 = vadd.xlane.f32.xlu0 %v435
  %v437 = vpop.xlane.xlu0 %436
  %v438 = vsel %vm232, %v434, 0.0
  %439 = vadd.xlane.f32.xlu0 %v438
  %v440 = vpop.xlane.xlu0 %439
  %v441 = vrcp.pop %v437
  %v442 = vrcp.pop %v440
  %v443 = vmul.f32 %v432, %v441
  %v444 = vmul.f32 %v434, %v442
  %446 = vrot.lane.b32.xlu0 %v146, 112
  %v447 = vpop.permute.xlu0 %446
  %v450 = vsel %vm232, %v443, 0
  %v453 = vsel %vm232, %v444, 0
  %455 = vmatprep.subr.mxu0 0.0
  %456 = vmatpush1.msra.mxu0 %v447
  %457 = vmatprep.subr.mxu0 0.0
  %458 = vmatpush1.msra.mxu0 0.0
  %459 = vmatprep.subr.mxu0 0.0
  %460 = vmatpush1.msra.mxu0 0.0
  %461 = vmatprep.subr.mxu0 0.0
  %462 = vmatpush1.msra.mxu0 0.0
  %463 = vmatprep.subr.mxu0 0.0
  %464 = vmatpush1.msra.mxu0 0.0
  %465 = vmatprep.subr.mxu0 0.0
  %466 = vmatpush1.msra.mxu0 0.0
  %467 = vmatprep.subr.mxu0 0.0
  %468 = vmatpush1.msra.mxu0 0.0
  %469 = vmatprep.subr.mxu0 0.0
  %470 = vmatpush1.msra.mxu0 0.0
  %471 = vmatprep.subr.mxu0 0.0
  %472 = vmatpush1.msra.mxu0 0.0
  %473 = vmatprep.subr.mxu0 0.0
  %474 = vmatpush1.msra.mxu0 0.0
  %475 = vmatprep.subr.mxu0 0.0
  %476 = vmatpush1.msra.mxu0 0.0
  %477 = vmatprep.subr.mxu0 0.0
  %478 = vmatpush1.msra.mxu0 0.0
  %479 = vmatprep.subr.mxu0 0.0
  %480 = vmatpush1.msra.mxu0 0.0
  %481 = vmatprep.subr.mxu0 0.0
  %482 = vmatpush1.msra.mxu0 0.0
  %483 = vmatprep.subr.mxu0 0.0
  %484 = vmatpush1.msra.mxu0 0.0
  %485 = vmatprep.subr.mxu0 0.0
  %486 = vmatpush1.msra.mxu0 0.0
  %487 = vmatprep.subr.mxu0 0.0
  %488 = vmatpush1.msra.mxu0 0.0
  %489 = vmatprep.subr.mxu0 0.0
  %490 = vmatpush1.msra.mxu0 0.0
  %491 = vmatprep.subr.mxu0 0.0
  %492 = vmatpush1.msra.mxu0 0.0
  %493 = vmatprep.subr.mxu0 0.0
  %494 = vmatpush1.msra.mxu0 0.0
  %495 = vmatprep.subr.mxu0 0.0
  %496 = vmatpush1.msra.mxu0 0.0
  %497 = vmatprep.subr.mxu0 0.0
  %498 = vmatpush1.msra.mxu0 0.0
  %499 = vmatprep.subr.mxu0 0.0
  %500 = vmatpush1.msra.mxu0 0.0
  %501 = vmatprep.subr.mxu0 0.0
  %502 = vmatpush1.msra.mxu0 0.0
  %503 = vmatprep.subr.mxu0 0.0
  %504 = vmatpush1.msra.mxu0 0.0
  %505 = vmatprep.subr.mxu0 0.0
  %506 = vmatpush1.msra.mxu0 0.0
  %507 = vmatprep.subr.mxu0 0.0
  %508 = vmatpush1.msra.mxu0 0.0
  %509 = vmatprep.subr.mxu0 0.0
  %510 = vmatpush1.msra.mxu0 0.0
  %511 = vmatprep.subr.mxu0 0.0
  %512 = vmatpush1.msra.mxu0 0.0
  %513 = vmatprep.subr.mxu0 0.0
  %514 = vmatpush1.msra.mxu0 0.0
  %515 = vmatprep.subr.mxu0 0.0
  %516 = vmatpush1.msra.mxu0 0.0
  %517 = vmatprep.subr.mxu0 0.0
  %518 = vmatpush1.msra.mxu0 0.0
  %519 = vmatprep.mubr.f32.mxu0 0.0
  %520 = vmatmul.mubr.f32.gmra.mrb[0].mxu0 %v450
  %v521 = vpop.f32.mrb[0].mxu0
  %v522 = vadd.f32 0.0, %v521
  %v523 = vpop.f32.mrb[0].mxu0
  %524 = vmatprep.mubr.f32.mxu0 0.0
  %525 = vmatmul.mubr.f32.gmra.mrb[0].mxu0 %v453
  %v526 = vpop.f32.mrb[0].mxu0
  %v527 = vadd.f32 0.0, %v526
  %v528 = vpop.f32.mrb[0].mxu0
  %529 = vdwg.mxu0
  %532 = vrot.lane.b32.xlu0 %v522, 16
  %v533 = vpop.permute.xlu0 %532
  %534 = vrot.lane.b32.xlu0 %v527, 16
  %v535 = vpop.permute.xlu0 %534
  %v538 = vsel %vm147, %v328, %v533
  %v539 = vsel %vm147, %v333, %v535
  %v540 = vld [vmem:[%s4] sm:$0xff]
  %v541 = vld [vmem:[%s4 + $0x8] sm:$0xff]
  %v542 = vld [vmem:[%s4 + $0x10] sm:$0xff]
  %v543 = vld [vmem:[%s4 + $0x18] sm:$0xff]
  %v545 = vsel %vm25, %v538, 0
  %v548 = vsel %vm25, %v539, 0
  %550 = vmatprep.subr.mxu0 0.0
  %551 = vmatpush1.msra.mxu0 %v540
  %552 = vmatprep.subr.mxu0 0.0
  %553 = vmatpush1.msra.mxu0 %v541
  %554 = vmatprep.subr.mxu0 0.0
  %555 = vmatpush1.msra.mxu0 %v542
  %556 = vmatprep.subr.mxu0 0.0
  %557 = vmatpush1.msra.mxu0 %v543
  %558 = vmatprep.subr.mxu0 0.0
  %559 = vmatpush1.msra.mxu0 0.0
  %560 = vmatprep.subr.mxu0 0.0
  %561 = vmatpush1.msra.mxu0 0.0
  %562 = vmatprep.subr.mxu0 0.0
  %563 = vmatpush1.msra.mxu0 0.0
  %564 = vmatprep.subr.mxu0 0.0
  %565 = vmatpush1.msra.mxu0 0.0
  %566 = vmatprep.subr.mxu0 0.0
  %567 = vmatpush1.msra.mxu0 0.0
  %568 = vmatprep.subr.mxu0 0.0
  %569 = vmatpush1.msra.mxu0 0.0
  %570 = vmatprep.subr.mxu0 0.0
  %571 = vmatpush1.msra.mxu0 0.0
  %572 = vmatprep.subr.mxu0 0.0
  %573 = vmatpush1.msra.mxu0 0.0
  %574 = vmatprep.subr.mxu0 0.0
  %575 = vmatpush1.msra.mxu0 0.0
  %576 = vmatprep.subr.mxu0 0.0
  %577 = vmatpush1.msra.mxu0 0.0
  %578 = vmatprep.subr.mxu0 0.0
  %579 = vmatpush1.msra.mxu0 0.0
  %580 = vmatprep.subr.mxu0 0.0
  %581 = vmatpush1.msra.mxu0 0.0
  %582 = vmatprep.subr.mxu0 0.0
  %583 = vmatpush1.msra.mxu0 0.0
  %584 = vmatprep.subr.mxu0 0.0
  %585 = vmatpush1.msra.mxu0 0.0
  %586 = vmatprep.subr.mxu0 0.0
  %587 = vmatpush1.msra.mxu0 0.0
  %588 = vmatprep.subr.mxu0 0.0
  %589 = vmatpush1.msra.mxu0 0.0
  %590 = vmatprep.subr.mxu0 0.0
  %591 = vmatpush1.msra.mxu0 0.0
  %592 = vmatprep.subr.mxu0 0.0
  %593 = vmatpush1.msra.mxu0 0.0
  %594 = vmatprep.subr.mxu0 0.0
  %595 = vmatpush1.msra.mxu0 0.0
  %596 = vmatprep.subr.mxu0 0.0
  %597 = vmatpush1.msra.mxu0 0.0
  %598 = vmatprep.subr.mxu0 0.0
  %599 = vmatpush1.msra.mxu0 0.0
  %600 = vmatprep.subr.mxu0 0.0
  %601 = vmatpush1.msra.mxu0 0.0
  %602 = vmatprep.subr.mxu0 0.0
  %603 = vmatpush1.msra.mxu0 0.0
  %604 = vmatprep.subr.mxu0 0.0
  %605 = vmatpush1.msra.mxu0 0.0
  %606 = vmatprep.subr.mxu0 0.0
  %607 = vmatpush1.msra.mxu0 0.0
  %608 = vmatprep.subr.mxu0 0.0
  %609 = vmatpush1.msra.mxu0 0.0
  %610 = vmatprep.subr.mxu0 0.0
  %611 = vmatpush1.msra.mxu0 0.0
  %612 = vmatprep.subr.mxu0 0.0
  %613 = vmatpush1.msra.mxu0 0.0
  %614 = vmatprep.mubr.f32.mxu0 0.0
  %615 = vmatmul.mubr.f32.gmra.mrb[0].mxu0 %v545
  %v616 = vpop.f32.mrb[0].mxu0
  %v617 = vadd.f32 0.0, %v616
  %v618 = vpop.f32.mrb[0].mxu0
  %619 = vmatprep.mubr.f32.mxu0 0.0
  %620 = vmatmul.mubr.f32.gmra.mrb[0].mxu0 %v548
  %v621 = vpop.f32.mrb[0].mxu0
  %v622 = vadd.f32 0.0, %v621
  %v623 = vpop.f32.mrb[0].mxu0
  %624 = vdwg.mxu0
  %v625 = vadd.f32 %v23, %v617
  %v626 = vadd.f32 %v24, %v622
  %627 = vrot.lane.b32.xlu0 %v62, 96
  %v628 = vpop.permute.xlu0 %627
  %v630 = vadd.f32 %v625, %v628
  %v631 = vadd.f32 %v626, %v628
  %632 = vst.msk [vmem:[%s6] sm:$0xff] %vm25, %v630
  %633 = vst.msk [vmem:[%s6 + $0x8] sm:$0xff] %vm25, %v631
  // Predicated region
  $region26: #{context_module_forward.1} parent=0 // pred_check
    _
  $region27: #{context_module_forward.1} parent=0 // pred_check_branch
    %635 = sbr.rel (0) target = $region29
  $region28: #{context_module_forward.1} parent=0 // pred_region
    _
  $region29: #{context_module_forward.1} parent=0 // pred_fallthru
    _
  // Predicated region
  $region30: #{context_module_forward.1} parent=0 // pred_check
    _
  $region31: #{context_module_forward.1} parent=0 // pred_check_branch
    %637 = sbr.rel (0) target = $region33
  $region32: #{context_module_forward.1} parent=0 // pred_region
    _
  $region33: #{context_module_forward.1} parent=0 // pred_fallthru
    _

</llo_original>
